<compile_context>
chip_gen: v7x
topology: tpu7x:2x2x1
jax: 0.10.0
libtpu: 0.0.40
codegen_flags: <defaults>
</compile_context>

<pallas_src>
import functools

import jax
import jax.numpy as jnp
from jax.experimental import pallas as pl
from jax.experimental.pallas import tpu as pltpu


# ----------------------------- Pallas kernel ------------------------------ #
def reward_mlp_kernel(state_ref, next_ref, act_ref,
                      w1s_ref, w1a_ref, w1ns_ref, b1_ref,
                      w2_ref, b2_ref, w3t_ref, b3_ref, o_ref):
    # Per batch tile TB:
    #   state_ref/next_ref : (TB, S) f32      act_ref : (TB, 1) int32
    #   w1s/w1ns : (S, H1)   w1a : (A, H1)    b1 : (1, H1)
    #   w2 : (H1, H2)        b2 : (1, H2)
    #   w3t : (1, H2)        b3 : (1, 1) f32 in SMEM
    #   o_ref : (1, TB)  f32  -- batch on the lane axis (lane-dense store)
    tb = state_ref.shape[0]
    a = w1a_ref.shape[0]

    s = state_ref[...].astype(jnp.bfloat16)
    ns = next_ref[...].astype(jnp.bfloat16)

    # One-hot(action) built on the VPU (iota compare) -- no HBM concat/one_hot.
    # Note: out-of-range actions yield all-zero rows (torch scatter_ would
    # error); callers must pass actions in [0, action_size).
    act = act_ref[...]                                          # (TB, 1) int32
    a_iota = jax.lax.broadcasted_iota(jnp.int32, (tb, a), 1)    # (TB, A)
    one_hot = jnp.where(act == a_iota, 1.0, 0.0).astype(jnp.bfloat16)

    # Layer 1:  x @ W1 == state@W1[:S] + one_hot@W1[S:S+A] + next@W1[S+A:]
    h1 = (jnp.dot(s, w1s_ref[...].astype(jnp.bfloat16),
                  preferred_element_type=jnp.float32)
          + jnp.dot(one_hot, w1a_ref[...].astype(jnp.bfloat16),
                    preferred_element_type=jnp.float32)
          + jnp.dot(ns, w1ns_ref[...].astype(jnp.bfloat16),
                    preferred_element_type=jnp.float32)
          + b1_ref[...])
    h1 = jnp.maximum(h1, 0.0)                                   # relu (f32)

    # Layer 2
    h2 = jnp.dot(h1.astype(jnp.bfloat16), w2_ref[...].astype(jnp.bfloat16),
                 preferred_element_type=jnp.float32) + b2_ref[...]
    h2 = jnp.maximum(h2, 0.0)                                   # relu (f32)

    # Layer 3, computed transposed: (1, H2) . (TB, H2)^T -> (1, TB) so the
    # store is lane-dense (batch on lanes) instead of a 1-lane masked store.
    y = jax.lax.dot_general(
        w3t_ref[...].astype(jnp.bfloat16), h2.astype(jnp.bfloat16),
        dimension_numbers=(((1,), (1,)), ((), ())),
        preferred_element_type=jnp.float32)                     # (1, TB)
    o_ref[...] = jnp.tanh(y + b3_ref[0, 0])


# ------------------------------- wrapper ----------------------------------- #
@functools.partial(jax.jit, static_argnums=(4,))
def reward_model_forward(state, action, next_state, params, action_size):
    """state, next_state: (B, S) f32; action: (B,) int; returns (B, 1) f32."""
    w1, b1, w2, b2, w3, b3 = params
    B, S = state.shape
    A = int(action_size)
    H1 = w1.shape[1]
    H2 = w2.shape[1]

    # Split W1 once so the one-hot/concat never has to be materialized.
    w1s, w1a, w1ns = w1[:S], w1[S:S + A], w1[S + A:]
    w3t = w3.T                                                  # (1, H2)

    # Batch tiling: a single tile for small batches, lane-aligned 1024-row
    # tiles otherwise. 1024-row tiles keep double-buffered inputs + activations
    # far below the VMEM limits of v5e/v6e (128 MiB) and v7x (64 MiB).
    b_ceil8 = ((B + 7) // 8) * 8
    tb = b_ceil8 if b_ceil8 <= 1024 else 1024
    g = pl.cdiv(b_ceil8, tb)
    b_pad = g * tb

    pad = b_pad - B
    if pad:
        state = jnp.pad(state, ((0, pad), (0, 0)))
        next_state = jnp.pad(next_state, ((0, pad), (0, 0)))
        action = jnp.pad(action, ((0, pad),))
    act2d = action.astype(jnp.int32).reshape(b_pad, 1)

    batch_spec = lambda cols: pl.BlockSpec((tb, cols), lambda i: (i, 0))
    const = lambda i: (0, 0)                     # weights stay VMEM-resident

    d_in = 2 * S + A
    cost = pl.CostEstimate(
        flops=2 * B * (d_in * H1 + H1 * H2 + H2),
        transcendentals=B,
        bytes_accessed=4 * (2 * B * S + 2 * B + w1.size + b1.size
                            + w2.size + b2.size + w3.size + b3.size),
    )

    out = pl.pallas_call(
        reward_mlp_kernel,
        out_shape=jax.ShapeDtypeStruct((1, b_pad), jnp.float32),
        grid=(g,),
        in_specs=[
            batch_spec(S),                       # state
            batch_spec(S),                       # next_state
            batch_spec(1),                       # action (int32 column)
            pl.BlockSpec((S, H1), const),        # W1[:S]
            pl.BlockSpec((A, H1), const),        # W1[S:S+A]
            pl.BlockSpec((S, H1), const),        # W1[S+A:]
            pl.BlockSpec((1, H1), const),        # b1
            pl.BlockSpec((H1, H2), const),       # W2
            pl.BlockSpec((1, H2), const),        # b2
            pl.BlockSpec((1, H2), const),        # W3^T
            pl.BlockSpec((1, 1), const, memory_space=pltpu.MemorySpace.SMEM),  # b3
        ],
        out_specs=pl.BlockSpec((1, tb), lambda i: (0, i)),
        compiler_params=pltpu.CompilerParams(
            dimension_semantics=("parallel",)),
        cost_estimate=cost,
    )(state, next_state, act2d, w1s, w1a, w1ns, b1, w2, b2, w3t, b3)

    return out[0, :B][:, None]                                   # (B, 1)


# --------------------------- parameter creation ---------------------------- #
def init_params(key, state_size, action_size):
    d_in = state_size * 2 + action_size
    dims = [(d_in, 64), (64, 32), (32, 1)]
    params = []
    for fan_in, fan_out in dims:
        kw, kb, key = jax.random.split(key, 3)
        bound = 1.0 / jnp.sqrt(fan_in)           # nn.Linear default init range
        w = jax.random.uniform(kw, (fan_in, fan_out), jnp.float32, -bound, bound)
        b = jax.random.uniform(kb, (1, fan_out), jnp.float32, -bound, bound)
        params += [w, b]
    return tuple(params)


# ------------------------------ reference ---------------------------------- #
def reference_forward(state, action, next_state, params, action_size):
    w1, b1, w2, b2, w3, b3 = params
    one_hot = jax.nn.one_hot(action, action_size, dtype=state.dtype)
    x = jnp.concatenate([state, one_hot, next_state], axis=1)
    x = jax.nn.relu(x @ w1 + b1)
    x = jax.nn.relu(x @ w2 + b2)
    return jnp.tanh(x @ w3 + b3)


if __name__ == "__main__":
    # CartPole-v1: state_size=4, action_size=2
    STATE_SIZE, ACTION_SIZE, BATCH = 4, 2, 8

    key = jax.random.PRNGKey(0)
    k_params, k_s, k_a, k_ns = jax.random.split(key, 4)

    params = init_params(k_params, STATE_SIZE, ACTION_SIZE)
    state = jax.random.normal(k_s, (BATCH, STATE_SIZE), jnp.float32)
    next_state = jax.random.normal(k_ns, (BATCH, STATE_SIZE), jnp.float32)
    action = jax.random.randint(k_a, (BATCH,), 0, ACTION_SIZE, jnp.int32)

    out = reward_model_forward(state, action, next_state, params, ACTION_SIZE)
    out = jax.block_until_ready(out)

    ref = reference_forward(state, action, next_state, params, ACTION_SIZE)
    assert out.shape == (BATCH, 1)
    # bf16 MXU operands (f32 accumulation) introduce ~0.4% relative rounding.
    assert jnp.allclose(out, ref, atol=2e-2, rtol=0.0), \
        f"max abs diff {jnp.max(jnp.abs(out - ref))}"

    print("KERNEL_OK")
</pallas_src>

<mosaic_0001>
module attributes {stable_mosaic.version = 11 : i64} {
  func.func @reward_mlp_kernel(%arg0: i32, %arg1: memref<8x4xf32, #tpu.memory_space<vmem>>, %arg2: memref<8x4xf32, #tpu.memory_space<vmem>>, %arg3: memref<8x1xi32, #tpu.memory_space<vmem>>, %arg4: memref<4x64xf32, #tpu.memory_space<vmem>>, %arg5: memref<2x64xf32, #tpu.memory_space<vmem>>, %arg6: memref<4x64xf32, #tpu.memory_space<vmem>>, %arg7: memref<1x64xf32, #tpu.memory_space<vmem>>, %arg8: memref<64x32xf32, #tpu.memory_space<vmem>>, %arg9: memref<1x32xf32, #tpu.memory_space<vmem>>, %arg10: memref<1x32xf32, #tpu.memory_space<vmem>>, %arg11: memref<1x1xf32, #tpu.memory_space<smem>>, %arg12: memref<1x8xf32, #tpu.memory_space<vmem>>) attributes {dimension_semantics = [#tpu.dimension_semantics<parallel>], iteration_bounds = array<i64: 1>, scalar_prefetch = 0 : i64, scratch_operands = 0 : i64, tpu.core_type = #tpu.core_type<tc>, window_params = [{transform_indices = @transform_0, window_bounds = array<i64: 8, 4>}, {transform_indices = @transform_1, window_bounds = array<i64: 8, 4>}, {transform_indices = @transform_2, window_bounds = array<i64: 8, 1>}, {pipeline_mode = #tpu.pipeline_mode<synchronous>, transform_indices = @transform_3, window_bounds = array<i64: 4, 64>}, {pipeline_mode = #tpu.pipeline_mode<synchronous>, transform_indices = @transform_4, window_bounds = array<i64: 2, 64>}, {pipeline_mode = #tpu.pipeline_mode<synchronous>, transform_indices = @transform_5, window_bounds = array<i64: 4, 64>}, {pipeline_mode = #tpu.pipeline_mode<synchronous>, transform_indices = @transform_6, window_bounds = array<i64: 1, 64>}, {pipeline_mode = #tpu.pipeline_mode<synchronous>, transform_indices = @transform_7, window_bounds = array<i64: 64, 32>}, {pipeline_mode = #tpu.pipeline_mode<synchronous>, transform_indices = @transform_8, window_bounds = array<i64: 1, 32>}, {pipeline_mode = #tpu.pipeline_mode<synchronous>, transform_indices = @transform_9, window_bounds = array<i64: 1, 32>}, {transform_indices = @transform_10, window_bounds = array<i64: 1, 1>}, {transform_indices = @transform_11, window_bounds = array<i64: 1, 8>}]} {
    %c0 = arith.constant 0 : index
    %c0_0 = arith.constant 0 : index
    %0 = vector.load %arg1[%c0, %c0_0] : memref<8x4xf32, #tpu.memory_space<vmem>>, vector<8x4xf32>
    %1 = arith.truncf %0 : vector<8x4xf32> to vector<8x4xbf16>
    %c0_1 = arith.constant 0 : index
    %c0_2 = arith.constant 0 : index
    %2 = vector.load %arg2[%c0_1, %c0_2] : memref<8x4xf32, #tpu.memory_space<vmem>>, vector<8x4xf32>
    %3 = arith.truncf %2 : vector<8x4xf32> to vector<8x4xbf16>
    %c0_3 = arith.constant 0 : index
    %c0_4 = arith.constant 0 : index
    %4 = vector.load %arg3[%c0_3, %c0_4] : memref<8x1xi32, #tpu.memory_space<vmem>>, vector<8x1xi32>
    %5 = tpu.iota {dimensions = array<i32: 1>} : vector<8x2xi32>
    %6 = vector.broadcast %4 : vector<8x1xi32> to vector<8x2xi32>
    %7 = arith.cmpi eq, %6, %5 : vector<8x2xi32>
    %cst = arith.constant 1.000000e+00 : f32
    %cst_5 = arith.constant 0.000000e+00 : f32
    %8 = vector.broadcast %cst : f32 to vector<8x2xf32>
    %9 = vector.broadcast %cst_5 : f32 to vector<8x2xf32>
    %10 = arith.select %7, %8, %9 : vector<8x2xi1>, vector<8x2xf32>
    %11 = arith.truncf %10 : vector<8x2xf32> to vector<8x2xbf16>
    %c0_6 = arith.constant 0 : index
    %c0_7 = arith.constant 0 : index
    %12 = vector.load %arg4[%c0_6, %c0_7] : memref<4x64xf32, #tpu.memory_space<vmem>>, vector<4x64xf32>
    %13 = arith.truncf %12 : vector<4x64xf32> to vector<4x64xbf16>
    %cst_8 = arith.constant dense<0.000000e+00> : vector<8x64xf32>
    %14 = tpu.matmul %1, %13, %cst_8 {dimension_numbers = #tpu.dot_dimension_numbers<[1], [0], [0], [1], [0, 0, 1, 1], [], []>} : vector<8x4xbf16>, vector<4x64xbf16>, vector<8x64xf32> -> vector<8x64xf32>
    %c0_9 = arith.constant 0 : index
    %c0_10 = arith.constant 0 : index
    %15 = vector.load %arg5[%c0_9, %c0_10] : memref<2x64xf32, #tpu.memory_space<vmem>>, vector<2x64xf32>
    %16 = arith.truncf %15 : vector<2x64xf32> to vector<2x64xbf16>
    %cst_11 = arith.constant dense<0.000000e+00> : vector<8x64xf32>
    %17 = tpu.matmul %11, %16, %cst_11 {dimension_numbers = #tpu.dot_dimension_numbers<[1], [0], [0], [1], [0, 0, 1, 1], [], []>} : vector<8x2xbf16>, vector<2x64xbf16>, vector<8x64xf32> -> vector<8x64xf32>
    %18 = arith.addf %14, %17 : vector<8x64xf32>
    %c0_12 = arith.constant 0 : index
    %c0_13 = arith.constant 0 : index
    %19 = vector.load %arg6[%c0_12, %c0_13] : memref<4x64xf32, #tpu.memory_space<vmem>>, vector<4x64xf32>
    %20 = arith.truncf %19 : vector<4x64xf32> to vector<4x64xbf16>
    %cst_14 = arith.constant dense<0.000000e+00> : vector<8x64xf32>
    %21 = tpu.matmul %3, %20, %cst_14 {dimension_numbers = #tpu.dot_dimension_numbers<[1], [0], [0], [1], [0, 0, 1, 1], [], []>} : vector<8x4xbf16>, vector<4x64xbf16>, vector<8x64xf32> -> vector<8x64xf32>
    %22 = arith.addf %18, %21 : vector<8x64xf32>
    %c0_15 = arith.constant 0 : index
    %c0_16 = arith.constant 0 : index
    %23 = vector.load %arg7[%c0_15, %c0_16] : memref<1x64xf32, #tpu.memory_space<vmem>>, vector<1x64xf32>
    %24 = vector.broadcast %23 : vector<1x64xf32> to vector<8x64xf32>
    %25 = arith.addf %22, %24 : vector<8x64xf32>
    %cst_17 = arith.constant 0.000000e+00 : f32
    %26 = vector.broadcast %cst_17 : f32 to vector<8x64xf32>
    %27 = arith.maximumf %25, %26 : vector<8x64xf32>
    %28 = arith.truncf %27 : vector<8x64xf32> to vector<8x64xbf16>
    %c0_18 = arith.constant 0 : index
    %c0_19 = arith.constant 0 : index
    %29 = vector.load %arg8[%c0_18, %c0_19] : memref<64x32xf32, #tpu.memory_space<vmem>>, vector<64x32xf32>
    %30 = arith.truncf %29 : vector<64x32xf32> to vector<64x32xbf16>
    %cst_20 = arith.constant dense<0.000000e+00> : vector<8x32xf32>
    %31 = tpu.matmul %28, %30, %cst_20 {dimension_numbers = #tpu.dot_dimension_numbers<[1], [0], [0], [1], [0, 0, 1, 1], [], []>} : vector<8x64xbf16>, vector<64x32xbf16>, vector<8x32xf32> -> vector<8x32xf32>
    %c0_21 = arith.constant 0 : index
    %c0_22 = arith.constant 0 : index
    %32 = vector.load %arg9[%c0_21, %c0_22] : memref<1x32xf32, #tpu.memory_space<vmem>>, vector<1x32xf32>
    %33 = vector.broadcast %32 : vector<1x32xf32> to vector<8x32xf32>
    %34 = arith.addf %31, %33 : vector<8x32xf32>
    %cst_23 = arith.constant 0.000000e+00 : f32
    %35 = vector.broadcast %cst_23 : f32 to vector<8x32xf32>
    %36 = arith.maximumf %34, %35 : vector<8x32xf32>
    %c0_24 = arith.constant 0 : index
    %c0_25 = arith.constant 0 : index
    %37 = vector.load %arg10[%c0_24, %c0_25] : memref<1x32xf32, #tpu.memory_space<vmem>>, vector<1x32xf32>
    %38 = arith.truncf %37 : vector<1x32xf32> to vector<1x32xbf16>
    %39 = arith.truncf %36 : vector<8x32xf32> to vector<8x32xbf16>
    %cst_26 = arith.constant dense<0.000000e+00> : vector<1x8xf32>
    %40 = tpu.matmul %38, %39, %cst_26 {dimension_numbers = #tpu.dot_dimension_numbers<[1], [1], [0], [0], [0, 0, 1, 0], [], []>} : vector<1x32xbf16>, vector<8x32xbf16>, vector<1x8xf32> -> vector<1x8xf32>
    %c0_27 = arith.constant 0 : index
    %c0_28 = arith.constant 0 : index
    %41 = memref.load %arg11[%c0_27, %c0_28] : memref<1x1xf32, #tpu.memory_space<smem>>
    %42 = vector.broadcast %41 : f32 to vector<1x8xf32>
    %43 = arith.addf %40, %42 : vector<1x8xf32>
    %44 = math.tanh %43 : vector<1x8xf32>
    %c0_29 = arith.constant 0 : index
    %c0_30 = arith.constant 0 : index
    %45 = vector.load %arg12[%c0_29, %c0_30] : memref<1x8xf32, #tpu.memory_space<vmem>>, vector<1x8xf32>
    tpu.vector_store %arg12[%c0_29, %c0_30], %44 {strides = array<i32>} : memref<1x8xf32, #tpu.memory_space<vmem>>, vector<1x8xf32>,
    return
  }
  func.func @transform_0(%arg0: i32) -> (i32, i32) {
    %c0_i32 = arith.constant 0 : i32
    %c0_i32_0 = arith.constant 0 : i32
    return %arg0, %c0_i32 : i32, i32
  }
  func.func @transform_1(%arg0: i32) -> (i32, i32) {
    %c0_i32 = arith.constant 0 : i32
    %c0_i32_0 = arith.constant 0 : i32
    return %arg0, %c0_i32 : i32, i32
  }
  func.func @transform_2(%arg0: i32) -> (i32, i32) {
    %c0_i32 = arith.constant 0 : i32
    %c0_i32_0 = arith.constant 0 : i32
    return %arg0, %c0_i32 : i32, i32
  }
  func.func @transform_3(%arg0: i32) -> (i32, i32) {
    %c0_i32 = arith.constant 0 : i32
    %c0_i32_0 = arith.constant 0 : i32
    %c0_i32_1 = arith.constant 0 : i32
    return %c0_i32, %c0_i32_0 : i32, i32
  }
  func.func @transform_4(%arg0: i32) -> (i32, i32) {
    %c0_i32 = arith.constant 0 : i32
    %c0_i32_0 = arith.constant 0 : i32
    %c0_i32_1 = arith.constant 0 : i32
    return %c0_i32, %c0_i32_0 : i32, i32
  }
  func.func @transform_5(%arg0: i32) -> (i32, i32) {
    %c0_i32 = arith.constant 0 : i32
    %c0_i32_0 = arith.constant 0 : i32
    %c0_i32_1 = arith.constant 0 : i32
    return %c0_i32, %c0_i32_0 : i32, i32
  }
  func.func @transform_6(%arg0: i32) -> (i32, i32) {
    %c0_i32 = arith.constant 0 : i32
    %c0_i32_0 = arith.constant 0 : i32
    %c0_i32_1 = arith.constant 0 : i32
    return %c0_i32, %c0_i32_0 : i32, i32
  }
  func.func @transform_7(%arg0: i32) -> (i32, i32) {
    %c0_i32 = arith.constant 0 : i32
    %c0_i32_0 = arith.constant 0 : i32
    %c0_i32_1 = arith.constant 0 : i32
    return %c0_i32, %c0_i32_0 : i32, i32
  }
  func.func @transform_8(%arg0: i32) -> (i32, i32) {
    %c0_i32 = arith.constant 0 : i32
    %c0_i32_0 = arith.constant 0 : i32
    %c0_i32_1 = arith.constant 0 : i32
    return %c0_i32, %c0_i32_0 : i32, i32
  }
  func.func @transform_9(%arg0: i32) -> (i32, i32) {
    %c0_i32 = arith.constant 0 : i32
    %c0_i32_0 = arith.constant 0 : i32
    %c0_i32_1 = arith.constant 0 : i32
    return %c0_i32, %c0_i32_0 : i32, i32
  }
  func.func @transform_10(%arg0: i32) -> (i32, i32) {
    %c0_i32 = arith.constant 0 : i32
    %c0_i32_0 = arith.constant 0 : i32
    %c0_i32_1 = arith.constant 0 : i32
    return %c0_i32, %c0_i32_0 : i32, i32
  }
  func.func @transform_11(%arg0: i32) -> (i32, i32) {
    %c0_i32 = arith.constant 0 : i32
    %c0_i32_0 = arith.constant 0 : i32
    return %c0_i32, %arg0 : i32, i32
  }
}

</mosaic_0001>

<llo_original>
// kernel: reward_model_forward.1
$region0: #{reward_model_forward.1}
  #allocation0 [shape = 'u32[]', space=smem, size = 0x4, offset = 0x4, fixed_abs, tag = 'smem constant byte address 0x4 - core index']
  #allocation1 [shape = 'u32[144,128]{1,0:T(1,128)}', space=vmem, size = 0x12000, scoped, tag = 'internal scratch']
  #allocation2 [shape = 'f32[1,1]{1,0:T(1,128)S(6)}', space=smem, size = 0x200, scoped, tag = 'scoped memory for reward_model_forward.1']
  %s0 = inlined_call_operand.vmem [shape: f32[8,4], index: 0, kind: input, shape index: {}]
  %s1 = inlined_call_operand.vmem [shape: f32[8,4], index: 1, kind: input, shape index: {}]
  %s2 = inlined_call_operand.vmem [shape: s32[8,1], index: 2, kind: input, shape index: {}]
  %s3 = inlined_call_operand.vmem [shape: f32[4,64], index: 3, kind: input, shape index: {}]
  %s4 = inlined_call_operand.vmem [shape: f32[2,64], index: 4, kind: input, shape index: {}]
  %s5 = inlined_call_operand.vmem [shape: f32[4,64], index: 5, kind: input, shape index: {}]
  %s6 = inlined_call_operand.vmem [shape: f32[1,64], index: 6, kind: input, shape index: {}]
  %s7 = inlined_call_operand.vmem [shape: f32[64,32], index: 7, kind: input, shape index: {}]
  %s8 = inlined_call_operand.vmem [shape: f32[1,32], index: 8, kind: input, shape index: {}]
  %s9 = inlined_call_operand.vmem [shape: f32[1,32], index: 9, kind: input, shape index: {}]
  %s10 = inlined_call_operand.<no memory space> [shape: f32[1,1], index: 10, kind: input, shape index: {}]
  %s11 = inlined_call_operand.hbm [shape: f32[1,8], index: 11, kind: output, shape index: {}]
  %s12 = sld [smem:[#allocation0]]
  $region54: #{reward_model_forward.1} parent=0
    _
  %s14 = ssub.s32 1, %s12
  %s15 = scalar_select 0, %s14, %s12
  %16 = sst [smem:[#allocation2]] %s10
  $region1: #{reward_model_forward.1} parent=0
    #allocation3 [shape = 'u8[512]{0}', space=vmem, size = 0x400, scoped, tag = 'output window, operand 0, single buffered']
    #allocation4 [shape = 's32[1]{0}', space=sflag, size = 0x4, scoped, tag = 'scoped memory for reward_model_forward.1']
    %17 = vsyncpa [#allocation4], 0
    // Predicated region
    $region2: #{reward_model_forward.1} parent=1 // pred_check
      _
    $region3: #{reward_model_forward.1} parent=1 // pred_check_branch
      %19 = sbr.rel (0) target = $region5
    $region4: #{reward_model_forward.1} parent=1 // pred_region
      _
    $region5: #{reward_model_forward.1} parent=1 // pred_fallthru
      _
    // Predicated region
    $region6: #{reward_model_forward.1} parent=1 // pred_check
      _
    $region7: #{reward_model_forward.1} parent=1 // pred_check_branch
      %21 = sbr.rel (0) target = $region9
    $region8: #{reward_model_forward.1} parent=1 // pred_region
      _
    $region9: #{reward_model_forward.1} parent=1 // pred_fallthru
      _
    // Predicated region
    $region10: #{reward_model_forward.1} parent=1 // pred_check
      _
    $region11: #{reward_model_forward.1} parent=1 // pred_check_branch
      %23 = sbr.rel (0) target = $region13
    $region12: #{reward_model_forward.1} parent=1 // pred_region
      _
    $region13: #{reward_model_forward.1} parent=1 // pred_fallthru
      _
    // Predicated region
    $region14: #{reward_model_forward.1} parent=1 // pred_check
      _
    $region15: #{reward_model_forward.1} parent=1 // pred_check_branch
      %25 = sbr.rel (0) target = $region17
    $region16: #{reward_model_forward.1} parent=1 // pred_region
      _
    $region17: #{reward_model_forward.1} parent=1 // pred_fallthru
      _
    // Predicated region
    $region18: #{reward_model_forward.1} parent=1 // pred_check
      _
    $region19: #{reward_model_forward.1} parent=1 // pred_check_branch
      %27 = sbr.rel (0) target = $region21
    $region20: #{reward_model_forward.1} parent=1 // pred_region
      _
    $region21: #{reward_model_forward.1} parent=1 // pred_fallthru
      _
    // Predicated region
    $region22: #{reward_model_forward.1} parent=1 // pred_check
      _
    $region23: #{reward_model_forward.1} parent=1 // pred_check_branch
      %29 = sbr.rel (0) target = $region25
    $region24: #{reward_model_forward.1} parent=1 // pred_region
      _
    $region25: #{reward_model_forward.1} parent=1 // pred_fallthru
      _
    // Predicated region
    $region26: #{reward_model_forward.1} parent=1 // pred_check
      _
    $region27: #{reward_model_forward.1} parent=1 // pred_check_branch
      %31 = sbr.rel (0) target = $region29
    $region28: #{reward_model_forward.1} parent=1 // pred_region
      _
    $region29: #{reward_model_forward.1} parent=1 // pred_fallthru
      _
    // Predicated region
    $region30: #{reward_model_forward.1} parent=1 // pred_check
      _
    $region31: #{reward_model_forward.1} parent=1 // pred_check_branch
      %33 = sbr.rel (0) target = $region33
    $region32: #{reward_model_forward.1} parent=1 // pred_region
      _
    $region33: #{reward_model_forward.1} parent=1 // pred_fallthru
      _
    // Predicated region
    $region34: #{reward_model_forward.1} parent=1 // pred_check
      _
    $region35: #{reward_model_forward.1} parent=1 // pred_check_branch
      %35 = sbr.rel (0) target = $region37
    $region36: #{reward_model_forward.1} parent=1 // pred_region
      _
    $region37: #{reward_model_forward.1} parent=1 // pred_fallthru
      _
    // Predicated region
    $region38: #{reward_model_forward.1} parent=1 // pred_check
      _
    $region39: #{reward_model_forward.1} parent=1 // pred_check_branch
      %37 = sbr.rel (0) target = $region41
    $region40: #{reward_model_forward.1} parent=1 // pred_region
      _
    $region41: #{reward_model_forward.1} parent=1 // pred_fallthru
      _
    // Predicated region
    $region42: #{reward_model_forward.1} parent=1 // pred_check
      _
    $region43: #{reward_model_forward.1} parent=1 // pred_check_branch
      %39 = sbr.rel (0) target = $region45
    $region44: #{reward_model_forward.1} parent=1 // pred_region
      _
    $region45: #{reward_model_forward.1} parent=1 // pred_fallthru
      _
    %v41 = vld [vmem:[%s0] sm:$0xff]
    %v42 = vpack.c.bf16 %v41, %v41
    %v43 = vld [vmem:[%s1] sm:$0xff]
    %v44 = vpack.c.bf16 %v43, %v43
    %v45 = vld [vmem:[%s2] sm:$0xff]
    %v46 = vlaneseq
    %v47 = vand.u32 %v46, 127
    %48 = vset.pattern.permute.xlu0 0
    %49 = vperm.xlu0 %48, %v45
    %v50 = vpop.permute.xlu0 %49
    %vm51 = vcmp.eq.s32.totalorder %v50, %v47
    %v52 = vsel %vm51, 1.0, 0.0
    %v53 = vpack.c.bf16 %v52, %v52
    %v54 = vld [vmem:[%s3] sm:$0xf]
    %v55 = vpack.c.bf16 %v54, %v54
    %v56 = vld [vmem:[%s4] sm:$0x3]
    %v57 = vpack.c.bf16 %v56, %v56
    %vm58 = vcmask 15360
    %v60 = vsel %vm58, %v53, 0
    %vm62 = vcmask 1040384
    %v64 = vsel %vm62, %v57, 0
    %66 = vmatprep.subr.bf16.mxu0 0
    %67 = vmatpush1.bf16.msra.mxu0 %v64
    %68 = vmatprep.subr.bf16.mxu0 0
    %69 = vmatpush1.bf16.msra.mxu0 0
    %70 = vmatprep.subr.bf16.mxu0 0
    %71 = vmatpush1.bf16.msra.mxu0 0
    %72 = vmatprep.subr.bf16.mxu0 0
    %73 = vmatpush1.bf16.msra.mxu0 0
    %74 = vmatprep.subr.bf16.mxu0 0
    %75 = vmatpush1.bf16.msra.mxu0 0
    %76 = vmatprep.subr.bf16.mxu0 0
    %77 = vmatpush1.bf16.msra.mxu0 0
    %78 = vmatprep.subr.bf16.mxu0 0
    %79 = vmatpush1.bf16.msra.mxu0 0
    %80 = vmatprep.subr.bf16.mxu0 0
    %81 = vmatpush1.bf16.msra.mxu0 0
    %82 = vmatprep.subr.bf16.mxu0 0
    %83 = vmatpush1.bf16.msra.mxu0 0
    %84 = vmatprep.subr.bf16.mxu0 0
    %85 = vmatpush1.bf16.msra.mxu0 0
    %86 = vmatprep.subr.bf16.mxu0 0
    %87 = vmatpush1.bf16.msra.mxu0 0
    %88 = vmatprep.subr.bf16.mxu0 0
    %89 = vmatpush1.bf16.msra.mxu0 0
    %90 = vmatprep.subr.bf16.mxu0 0
    %91 = vmatpush1.bf16.msra.mxu0 0
    %92 = vmatprep.subr.bf16.mxu0 0
    %93 = vmatpush1.bf16.msra.mxu0 0
    %94 = vmatprep.subr.bf16.mxu0 0
    %95 = vmatpush1.bf16.msra.mxu0 0
    %96 = vmatprep.subr.bf16.mxu0 0
    %97 = vmatpush1.bf16.msra.mxu0 0
    %98 = vmatprep.mubr.bf16.mxu0 0
    %99 = vmatmul.mubr.bf16.gmra.mrb[0].mxu0 %v60
    %v100 = vpop.f32.mrb[0].mxu0
    %v101 = vadd.f32 0.0, %v100
    %v102 = vpop.f32.mrb[0].mxu0
    %v103 = vpop.f32.mrb[0].mxu0
    %v104 = vpop.f32.mrb[0].mxu0
    %105 = vdwg.mxu0
    %vm106 = vcmask 31744
    %v108 = vsel %vm106, %v42, 0
    %vm110 = vcmask 1041408
    %v112 = vsel %vm110, %v55, 0
    %114 = vmatprep.subr.bf16.mxu0 0
    %115 = vmatpush1.bf16.msra.mxu0 %v112
    %116 = vmatprep.subr.bf16.mxu0 0
    %117 = vmatpush1.bf16.msra.mxu0 0
    %118 = vmatprep.subr.bf16.mxu0 0
    %119 = vmatpush1.bf16.msra.mxu0 0
    %120 = vmatprep.subr.bf16.mxu0 0
    %121 = vmatpush1.bf16.msra.mxu0 0
    %122 = vmatprep.subr.bf16.mxu0 0
    %123 = vmatpush1.bf16.msra.mxu0 0
    %124 = vmatprep.subr.bf16.mxu0 0
    %125 = vmatpush1.bf16.msra.mxu0 0
    %126 = vmatprep.subr.bf16.mxu0 0
    %127 = vmatpush1.bf16.msra.mxu0 0
    %128 = vmatprep.subr.bf16.mxu0 0
    %129 = vmatpush1.bf16.msra.mxu0 0
    %130 = vmatprep.subr.bf16.mxu0 0
    %131 = vmatpush1.bf16.msra.mxu0 0
    %132 = vmatprep.subr.bf16.mxu0 0
    %133 = vmatpush1.bf16.msra.mxu0 0
    %134 = vmatprep.subr.bf16.mxu0 0
    %135 = vmatpush1.bf16.msra.mxu0 0
    %136 = vmatprep.subr.bf16.mxu0 0
    %137 = vmatpush1.bf16.msra.mxu0 0
    %138 = vmatprep.subr.bf16.mxu0 0
    %139 = vmatpush1.bf16.msra.mxu0 0
    %140 = vmatprep.subr.bf16.mxu0 0
    %141 = vmatpush1.bf16.msra.mxu0 0
    %142 = vmatprep.subr.bf16.mxu0 0
    %143 = vmatpush1.bf16.msra.mxu0 0
    %144 = vmatprep.subr.bf16.mxu0 0
    %145 = vmatpush1.bf16.msra.mxu0 0
    %146 = vmatprep.mubr.bf16.mxu0 0
    %147 = vmatmul.mubr.bf16.gmra.mrb[0].mxu0 %v108
    %v148 = vpop.f32.mrb[0].mxu0
    %v149 = vadd.f32 %v101, %v148
    %v150 = vpop.f32.mrb[0].mxu0
    %v151 = vpop.f32.mrb[0].mxu0
    %v152 = vpop.f32.mrb[0].mxu0
    %153 = vdwg.mxu0
    %v154 = vld [vmem:[%s5] sm:$0xf]
    %v155 = vpack.c.bf16 %v154, %v154
    %v157 = vsel %vm106, %v44, 0
    %v160 = vsel %vm110, %v155, 0
    %162 = vmatprep.subr.bf16.mxu0 0
    %163 = vmatpush1.bf16.msra.mxu0 %v160
    %164 = vmatprep.subr.bf16.mxu0 0
    %165 = vmatpush1.bf16.msra.mxu0 0
    %166 = vmatprep.subr.bf16.mxu0 0
    %167 = vmatpush1.bf16.msra.mxu0 0
    %168 = vmatprep.subr.bf16.mxu0 0
    %169 = vmatpush1.bf16.msra.mxu0 0
    %170 = vmatprep.subr.bf16.mxu0 0
    %171 = vmatpush1.bf16.msra.mxu0 0
    %172 = vmatprep.subr.bf16.mxu0 0
    %173 = vmatpush1.bf16.msra.mxu0 0
    %174 = vmatprep.subr.bf16.mxu0 0
    %175 = vmatpush1.bf16.msra.mxu0 0
    %176 = vmatprep.subr.bf16.mxu0 0
    %177 = vmatpush1.bf16.msra.mxu0 0
    %178 = vmatprep.subr.bf16.mxu0 0
    %179 = vmatpush1.bf16.msra.mxu0 0
    %180 = vmatprep.subr.bf16.mxu0 0
    %181 = vmatpush1.bf16.msra.mxu0 0
    %182 = vmatprep.subr.bf16.mxu0 0
    %183 = vmatpush1.bf16.msra.mxu0 0
    %184 = vmatprep.subr.bf16.mxu0 0
    %185 = vmatpush1.bf16.msra.mxu0 0
    %186 = vmatprep.subr.bf16.mxu0 0
    %187 = vmatpush1.bf16.msra.mxu0 0
    %188 = vmatprep.subr.bf16.mxu0 0
    %189 = vmatpush1.bf16.msra.mxu0 0
    %190 = vmatprep.subr.bf16.mxu0 0
    %191 = vmatpush1.bf16.msra.mxu0 0
    %192 = vmatprep.subr.bf16.mxu0 0
    %193 = vmatpush1.bf16.msra.mxu0 0
    %194 = vmatprep.mubr.bf16.mxu0 0
    %195 = vmatmul.mubr.bf16.gmra.mrb[0].mxu0 %v157
    %v196 = vpop.f32.mrb[0].mxu0
    %v197 = vadd.f32 0.0, %v196
    %v198 = vpop.f32.mrb[0].mxu0
    %v199 = vpop.f32.mrb[0].mxu0
    %v200 = vpop.f32.mrb[0].mxu0
    %201 = vdwg.mxu0
    %v202 = vadd.f32 %v149, %v197
    %v203 = vld [vmem:[%s6] sm:$0x1]
    %v205 = vlaneseq
    %v206 = vshrl.u32 %v205, 7
    %v207 = vsub.s32 0, %v206
    %v208 = vrot.slane %v203, %v207
    %v210 = vadd.f32 %v202, %v208
    %v211 = vmax.f32 %v210, 0.0
    %v212 = vpack.c.bf16 %v211, %v211
    %v213 = vld [vmem:[%s7] sm:$0xff]
    %v214 = vld [vmem:[%s7 + $0x8] sm:$0xff]
    %v215 = vld [vmem:[%s7 + $0x10] sm:$0xff]
    %v216 = vld [vmem:[%s7 + $0x18] sm:$0xff]
    %v217 = vld [vmem:[%s7 + $0x20] sm:$0xff]
    %v218 = vld [vmem:[%s7 + $0x28] sm:$0xff]
    %v219 = vld [vmem:[%s7 + $0x30] sm:$0xff]
    %v220 = vld [vmem:[%s7 + $0x38] sm:$0xff]
    %v221 = vpack.c.bf16 %v214, %v213
    %v222 = vpack.c.bf16 %v216, %v215
    %v223 = vpack.c.bf16 %v218, %v217
    %v224 = vpack.c.bf16 %v220, %v219
    %v225 = vld [vmem:[%s8] sm:$0x1]
    %v227 = vlaneseq
    %v228 = vshrl.u32 %v227, 7
    %v229 = vsub.s32 0, %v228
    %v230 = vrot.slane %v225, %v229
    %vm232 = vcmask 523264
    %v234 = vsel %vm232, %v212, 0
    %236 = vmatprep.subr.bf16.mxu0 0
    %237 = vmatpush1.bf16.msra.mxu0 %v221
    %238 = vmatprep.subr.bf16.mxu0 0
    %239 = vmatpush1.bf16.msra.mxu0 %v222
    %240 = vmatprep.subr.bf16.mxu0 0
    %241 = vmatpush1.bf16.msra.mxu0 %v223
    %242 = vmatprep.subr.bf16.mxu0 0
    %243 = vmatpush1.bf16.msra.mxu0 %v224
    %244 = vmatprep.subr.bf16.mxu0 0
    %245 = vmatpush1.bf16.msra.mxu0 0
    %246 = vmatprep.subr.bf16.mxu0 0
    %247 = vmatpush1.bf16.msra.mxu0 0
    %248 = vmatprep.subr.bf16.mxu0 0
    %249 = vmatpush1.bf16.msra.mxu0 0
    %250 = vmatprep.subr.bf16.mxu0 0
    %251 = vmatpush1.bf16.msra.mxu0 0
    %252 = vmatprep.subr.bf16.mxu0 0
    %253 = vmatpush1.bf16.msra.mxu0 0
    %254 = vmatprep.subr.bf16.mxu0 0
    %255 = vmatpush1.bf16.msra.mxu0 0
    %256 = vmatprep.subr.bf16.mxu0 0
    %257 = vmatpush1.bf16.msra.mxu0 0
    %258 = vmatprep.subr.bf16.mxu0 0
    %259 = vmatpush1.bf16.msra.mxu0 0
    %260 = vmatprep.subr.bf16.mxu0 0
    %261 = vmatpush1.bf16.msra.mxu0 0
    %262 = vmatprep.subr.bf16.mxu0 0
    %263 = vmatpush1.bf16.msra.mxu0 0
    %264 = vmatprep.subr.bf16.mxu0 0
    %265 = vmatpush1.bf16.msra.mxu0 0
    %266 = vmatprep.subr.bf16.mxu0 0
    %267 = vmatpush1.bf16.msra.mxu0 0
    %268 = vmatprep.mubr.bf16.mxu0 0
    %269 = vmatmul.mubr.bf16.gmra.mrb[0].mxu0 %v234
    %v270 = vpop.f32.mrb[0].mxu0
    %v271 = vadd.f32 %v230, %v270
    %v272 = vpop.f32.mrb[0].mxu0
    %v273 = vpop.f32.mrb[0].mxu0
    %v274 = vpop.f32.mrb[0].mxu0
    %275 = vdwg.mxu0
    %v276 = vmax.f32 %v271, 0.0
    %v277 = vld [vmem:[%s9] sm:$0x1]
    %v278 = vpack.c.bf16 %v277, %v277
    %v279 = vpack.c.bf16 %v276, %v276
    %s280 = sld [smem:[#allocation2]]
    %v281 = vstv %s280
    %vm282 = vcmask 261120
    %v284 = vsel %vm282, %v278, 0
    %v287 = vsel %vm282, %v279, 0
    %289 = vmatprep.subr.bf16.mxu0 0
    %290 = vmatpush1.bf16.xpose.msra.mxu0 %v287
    %291 = vmatprep.subr.bf16.mxu0 0
    %292 = vmatpush1.bf16.xpose.msra.mxu0 0
    %293 = vmatprep.subr.bf16.mxu0 0
    %294 = vmatpush1.bf16.xpose.msra.mxu0 0
    %295 = vmatprep.subr.bf16.mxu0 0
    %296 = vmatpush1.bf16.xpose.msra.mxu0 0
    %297 = vmatprep.subr.bf16.mxu0 0
    %298 = vmatpush1.bf16.xpose.msra.mxu0 0
    %299 = vmatprep.subr.bf16.mxu0 0
    %300 = vmatpush1.bf16.xpose.msra.mxu0 0
    %301 = vmatprep.subr.bf16.mxu0 0
    %302 = vmatpush1.bf16.xpose.msra.mxu0 0
    %303 = vmatprep.subr.bf16.mxu0 0
    %304 = vmatpush1.bf16.xpose.msra.mxu0 0
    %305 = vmatprep.subr.bf16.mxu0 0
    %306 = vmatpush1.bf16.xpose.msra.mxu0 0
    %307 = vmatprep.subr.bf16.mxu0 0
    %308 = vmatpush1.bf16.xpose.msra.mxu0 0
    %309 = vmatprep.subr.bf16.mxu0 0
    %310 = vmatpush1.bf16.xpose.msra.mxu0 0
    %311 = vmatprep.subr.bf16.mxu0 0
    %312 = vmatpush1.bf16.xpose.msra.mxu0 0
    %313 = vmatprep.subr.bf16.mxu0 0
    %314 = vmatpush1.bf16.xpose.msra.mxu0 0
    %315 = vmatprep.subr.bf16.mxu0 0
    %316 = vmatpush1.bf16.xpose.msra.mxu0 0
    %317 = vmatprep.subr.bf16.mxu0 0
    %318 = vmatpush1.bf16.xpose.msra.mxu0 0
    %319 = vmatprep.subr.bf16.mxu0 0
    %320 = vmatpush1.bf16.xpose.msra.mxu0 0
    %321 = vmatprep.mubr.bf16.mxu0 0
    %322 = vmatmul.mubr.bf16.gmra.mrb[0].mxu0 %v284
    %v323 = vpop.f32.mrb[0].mxu0
    %v324 = vadd.f32 %v281, %v323
    %v325 = vpop.f32.mrb[0].mxu0
    %v326 = vpop.f32.mrb[0].mxu0
    %v327 = vpop.f32.mrb[0].mxu0
    %328 = vdwg.mxu0
    %v329 = vtanh.pop %v324
    %vm330 = vcmask 57344
    %331 = vst.msk [vmem:[#allocation3] sm:$0x1] %vm330, %v329
    // Predicated region
    $region46: #{reward_model_forward.1} parent=1 // pred_check
      _
    $region47: #{reward_model_forward.1} parent=1 // pred_check_branch
      %333 = sbr.rel (0) target = $region49
    $region48: #{reward_model_forward.1} parent=1 // pred_region
      %s335 = ssub.s32 16, 16
      %336 = vsyncadd [#allocation4], %s335
      %s338 = sshll.u32 [#allocation3], 4
      %s339 = int_to_ptr.vmem [resolvable:$true] %s338
      %341 = dma.vmem_to_hbm [thread:$0]  %s339, 16, %s11, [#allocation4]
    $region49: #{reward_model_forward.1} parent=1 // pred_fallthru
      _
    // Predicated region
    $region50: #{reward_model_forward.1} parent=1 // pred_check
      _
    $region51: #{reward_model_forward.1} parent=1 // pred_check_branch
      %343 = sbr.rel (0) target = $region53
    $region52: #{reward_model_forward.1} parent=1 // pred_region
      %344 = dma.done [#allocation4], 16
    $region53: #{reward_model_forward.1} parent=1 // pred_fallthru
      _
    %345 = vsyncpa [#allocation4], 1

</llo_original>
